<compile_context>
chip_gen: v5e
topology: v5e:2x2
jax: 0.10.0
libtpu: 0.0.40
codegen_flags: <defaults>
</compile_context>

<pallas_src>
import functools

import jax
import jax.numpy as jnp
from jax.experimental import pallas as pl
from jax.experimental.pallas import tpu as pltpu

LN_LEN = 30          # nn.LayerNorm(30) in the reference module fixes L = 30
LN_EPS = 1e-5        # PyTorch LayerNorm default eps


# ---------------------------------------------------------------------------
# Pallas kernel: the FULL TCNModule for one batch chunk (Nb elements).
# ---------------------------------------------------------------------------
def tcn_module_kernel(*refs, layer_cfgs, kernel_size, L, Nb, eps):
    # refs = (x_ref, *param_refs, o_ref, slab_ref)
    #   x_ref    : (Nb, L, C0)        input activations for this batch chunk
    #   per layer: wf (K*Cin, Cout), b (1, Cout), gamma (L, 1), beta (L, 1),
    #              [dw (Cin, Cout), db (1, Cout)]   (only if Cin != Cout)
    #   o_ref    : (Nb, L, C_last)
    #   slab_ref : (Nb*L, K*max_cin)  VMEM im2col scratch (also does padding)
    n_params = sum(4 + (2 if has_ds else 0) for (_, _, _, has_ds) in layer_cfgs)
    x_ref = refs[0]
    params = refs[1:1 + n_params]
    o_ref = refs[1 + n_params]
    slab_ref = refs[2 + n_params]

    # Load the chunk's activations once (stay in VMEM/vregs across all layers).
    acts = [x_ref[n].astype(jnp.float32) for n in range(Nb)]   # each (L, Cin)

    pi = 0
    for (c_in, c_out, dil, has_ds) in layer_cfgs:
        pad = dil * (kernel_size - 1) // 2
        wf_ref, b_ref, gamma_ref, beta_ref = params[pi:pi + 4]
        pi += 4
        if has_ds:
            dw_ref, db_ref = params[pi:pi + 2]
            pi += 2

        # ---- Build the im2col slab (zero fill == "same" conv padding). ----
        slab_ref[...] = jnp.zeros(slab_ref.shape, jnp.float32)
        for n in range(Nb):
            for k in range(kernel_size):
                shift = k * dil - pad                 # x index = out index + shift
                src_lo = max(0, shift)
                src_hi = min(L, L + shift)
                rows = src_hi - src_lo
                if rows <= 0:
                    continue
                dst_lo = n * L + max(0, -shift)
                slab_ref[dst_lo:dst_lo + rows, k * c_in:(k + 1) * c_in] = (
                    acts[n][src_lo:src_hi, :])

        # ---- One MXU matmul for the whole batch chunk (all K taps fused). --
        slab = slab_ref[:, 0:kernel_size * c_in]              # (Nb*L, K*Cin)
        acc = jnp.dot(slab, wf_ref[...],
                      preferred_element_type=jnp.float32) + b_ref[...]

        gamma = gamma_ref[...]                                 # (L, 1)
        beta = beta_ref[...]
        if has_ds:
            dw = dw_ref[...]
            db = db_ref[...]

        # ---- LayerNorm(30) over L per channel, ReLU, residual (per element).
        new_acts = []
        for n in range(Nb):
            a = acc[n * L:(n + 1) * L, :]                      # (L, Cout)
            mean = jnp.mean(a, axis=0, keepdims=True)          # (1, Cout)
            var = jnp.mean((a - mean) ** 2, axis=0, keepdims=True)
            normed = (a - mean) * jax.lax.rsqrt(var + eps)
            out = jnp.maximum(normed * gamma + beta, 0.0)
            if has_ds:
                res = jnp.dot(acts[n], dw,
                              preferred_element_type=jnp.float32) + db
            else:
                res = acts[n]                                  # identity residual
            new_acts.append(out + res)
        acts = new_acts

    for n in range(Nb):
        o_ref[n] = acts[n].astype(o_ref.dtype)


# ---------------------------------------------------------------------------
# Wrapper
# ---------------------------------------------------------------------------
def _pick_batch_block(N, max_nb=8):
    """Largest divisor of N that is <= max_nb while keeping >= 2 grid chunks
    (so both v7x TensorCores get work)."""
    if N <= 1:
        return 1
    best = 1
    for nb in range(1, min(max_nb, N) + 1):
        if N % nb == 0 and N // nb >= 2:
            best = nb
    return best


def tcn_module_forward(x_ncl, params_list, kernel_size, batch_block=None):
    """TCNModule.forward. x_ncl: (N, C0, L) -> (N, C_last, L)."""
    N, C0, L = x_ncl.shape
    x_nlc = jnp.transpose(x_ncl, (0, 2, 1))                   # NCL -> NLC

    nb = batch_block if batch_block is not None else _pick_batch_block(N)
    assert N % nb == 0, (N, nb)
    n_chunks = N // nb

    layer_cfgs = []
    flat_inputs = []
    param_specs = []
    c_in = C0
    max_cin = C0
    for i, p in enumerate(params_list):
        c_out = p["wf"].shape[1]
        dil = 2 ** i
        # guard: conv only preserves L when dilation*(K-1) is even
        assert (kernel_size - 1) * dil % 2 == 0, "conv does not preserve L=30"
        assert p["wf"].shape[0] == kernel_size * c_in, (p["wf"].shape, c_in)
        has_ds = "dw" in p
        layer_cfgs.append((c_in, c_out, dil, has_ds))
        max_cin = max(max_cin, c_in)
        entries = [p["wf"], p["b"], p["gamma"], p["beta"]]
        if has_ds:
            entries += [p["dw"], p["db"]]
        for e in entries:
            flat_inputs.append(e)
            param_specs.append(pl.BlockSpec(e.shape, lambda g: (0, 0)))
        c_in = c_out
    c_last = c_in

    kern = functools.partial(
        tcn_module_kernel,
        layer_cfgs=tuple(layer_cfgs), kernel_size=kernel_size,
        L=L, Nb=nb, eps=LN_EPS)

    out_nlc = pl.pallas_call(
        kern,
        out_shape=jax.ShapeDtypeStruct((N, L, c_last), jnp.float32),
        grid=(n_chunks,),
        in_specs=[pl.BlockSpec((nb, L, C0), lambda g: (g, 0, 0))] + param_specs,
        out_specs=pl.BlockSpec((nb, L, c_last), lambda g: (g, 0, 0)),
        scratch_shapes=[pltpu.VMEM((nb * L, kernel_size * max_cin),
                                   jnp.float32)],
        compiler_params=pltpu.CompilerParams(
            dimension_semantics=("parallel",)),
    )(x_nlc, *flat_inputs)

    return jnp.transpose(out_nlc, (0, 2, 1))                  # NLC -> NCL


# ---------------------------------------------------------------------------
# Deterministic parameter construction (mirrors the PyTorch __init__ shapes)
# ---------------------------------------------------------------------------
def make_block_params(key, in_ch, out_ch, kernel_size, L):
    ks = jax.random.split(key, 7)
    # weight_norm(Conv1d): weight = g * v / ||v|| (norm over dims (1, 2))
    v = jax.random.normal(ks[0], (out_ch, in_ch, kernel_size), jnp.float32) * 0.3
    g = jax.random.uniform(ks[1], (out_ch,), jnp.float32, minval=0.5, maxval=1.5)
    norm = jnp.sqrt(jnp.sum(v * v, axis=(1, 2), keepdims=True))
    w = v * (g[:, None, None] / norm)                          # (Cout, Cin, K)
    # im2col layout: row index = k*Cin + c_in
    wf = jnp.transpose(w, (2, 1, 0)).reshape(kernel_size * in_ch, out_ch)
    b = (jax.random.normal(ks[2], (out_ch,), jnp.float32) * 0.1).reshape(1, out_ch)
    gamma = jax.random.uniform(ks[3], (L,), jnp.float32,
                               minval=0.5, maxval=1.5).reshape(L, 1)
    beta = (jax.random.normal(ks[4], (L,), jnp.float32) * 0.1).reshape(L, 1)
    p = dict(wf=wf, b=b, gamma=gamma, beta=beta)
    if in_ch != out_ch:
        dw = jax.random.normal(ks[5], (out_ch, in_ch), jnp.float32) * 0.3
        p["dw"] = dw.T                                          # (Cin, Cout)
        p["db"] = (jax.random.normal(ks[6], (out_ch,), jnp.float32)
                   * 0.1).reshape(1, out_ch)
    # downsample is None in PyTorch when in_ch == out_ch -> identity residual
    return p


def make_tcn_module_params(key, num_channels, kernel_size, L):
    params = []
    keys = jax.random.split(key, len(num_channels))
    for i in range(len(num_channels)):
        in_ch = num_channels[i - 1] if i > 0 else num_channels[0]
        out_ch = num_channels[i]
        params.append(make_block_params(keys[i], in_ch, out_ch, kernel_size, L))
    return params


# ---------------------------------------------------------------------------
# Pure-JAX reference (for a correctness check of the Pallas kernel)
# ---------------------------------------------------------------------------
def ref_block(x_nlc, p, kernel_size, dilation):
    N, L, c_in = x_nlc.shape
    c_out = p["wf"].shape[1]
    pad = dilation * (kernel_size - 1) // 2
    xpad = jnp.pad(x_nlc, ((0, 0), (pad, pad), (0, 0)))
    acc = jnp.zeros((N, L, c_out), jnp.float32) + p["b"][None, :, :]
    for k in range(kernel_size):
        wk = p["wf"][k * c_in:(k + 1) * c_in, :]
        acc = acc + jnp.einsum("nlc,co->nlo",
                               xpad[:, k * dilation:k * dilation + L, :], wk)
    mean = acc.mean(axis=1, keepdims=True)
    var = ((acc - mean) ** 2).mean(axis=1, keepdims=True)
    out = (acc - mean) / jnp.sqrt(var + LN_EPS)
    out = out * p["gamma"][None, :, :] + p["beta"][None, :, :]
    out = jnp.maximum(out, 0.0)
    if "dw" in p:
        res = jnp.einsum("nlc,co->nlo", x_nlc, p["dw"]) + p["db"][None, :, :]
    else:
        res = x_nlc
    return out + res


def ref_module(x_ncl, params_list, kernel_size):
    x = jnp.transpose(x_ncl, (0, 2, 1))
    for i, p in enumerate(params_list):
        x = ref_block(x, p, kernel_size, dilation=2 ** i)
    return jnp.transpose(x, (0, 2, 1))


# ---------------------------------------------------------------------------
if __name__ == "__main__":
    num_channels = (8, 16)   # TCNModule(num_channels=[8, 16], kernel_size=3)
    kernel_size = 3
    N, L = 2, LN_LEN         # seq length must be 30 (nn.LayerNorm(30))

    key = jax.random.PRNGKey(0)
    kx, kp = jax.random.split(key)
    x = jax.random.normal(kx, (N, num_channels[0], L), jnp.float32)  # NCL
    params = make_tcn_module_params(kp, num_channels, kernel_size, L)

    out = tcn_module_forward(x, params, kernel_size)
    out = jax.block_until_ready(out)

    expected = ref_module(x, params, kernel_size)
    assert out.shape == (N, num_channels[-1], L), out.shape
    assert bool(jnp.allclose(out, expected, atol=1e-4, rtol=1e-4)), (
        float(jnp.max(jnp.abs(out - expected))))

    print("KERNEL_OK")
</pallas_src>

<mosaic_0001>
module attributes {stable_mosaic.version = 11 : i64} {
  func.func @tcn_module_kernel(%arg0: i32, %arg1: memref<1x30x8xf32, #tpu.memory_space<vmem>>, %arg2: memref<24x8xf32, #tpu.memory_space<vmem>>, %arg3: memref<1x8xf32, #tpu.memory_space<vmem>>, %arg4: memref<30x1xf32, #tpu.memory_space<vmem>>, %arg5: memref<30x1xf32, #tpu.memory_space<vmem>>, %arg6: memref<24x16xf32, #tpu.memory_space<vmem>>, %arg7: memref<1x16xf32, #tpu.memory_space<vmem>>, %arg8: memref<30x1xf32, #tpu.memory_space<vmem>>, %arg9: memref<30x1xf32, #tpu.memory_space<vmem>>, %arg10: memref<8x16xf32, #tpu.memory_space<vmem>>, %arg11: memref<1x16xf32, #tpu.memory_space<vmem>>, %arg12: memref<1x30x16xf32, #tpu.memory_space<vmem>>, %arg13: memref<30x24xf32, #tpu.memory_space<vmem>>) attributes {dimension_semantics = [#tpu.dimension_semantics<parallel>], iteration_bounds = array<i64: 2>, scalar_prefetch = 0 : i64, scratch_operands = 1 : i64, tpu.core_type = #tpu.core_type<tc>, window_params = [{transform_indices = @transform_0, window_bounds = array<i64: 1, 30, 8>}, {pipeline_mode = #tpu.pipeline_mode<synchronous>, transform_indices = @transform_1, window_bounds = array<i64: 24, 8>}, {pipeline_mode = #tpu.pipeline_mode<synchronous>, transform_indices = @transform_2, window_bounds = array<i64: 1, 8>}, {pipeline_mode = #tpu.pipeline_mode<synchronous>, transform_indices = @transform_3, window_bounds = array<i64: 30, 1>}, {pipeline_mode = #tpu.pipeline_mode<synchronous>, transform_indices = @transform_4, window_bounds = array<i64: 30, 1>}, {pipeline_mode = #tpu.pipeline_mode<synchronous>, transform_indices = @transform_5, window_bounds = array<i64: 24, 16>}, {pipeline_mode = #tpu.pipeline_mode<synchronous>, transform_indices = @transform_6, window_bounds = array<i64: 1, 16>}, {pipeline_mode = #tpu.pipeline_mode<synchronous>, transform_indices = @transform_7, window_bounds = array<i64: 30, 1>}, {pipeline_mode = #tpu.pipeline_mode<synchronous>, transform_indices = @transform_8, window_bounds = array<i64: 30, 1>}, {pipeline_mode = #tpu.pipeline_mode<synchronous>, transform_indices = @transform_9, window_bounds = array<i64: 8, 16>}, {pipeline_mode = #tpu.pipeline_mode<synchronous>, transform_indices = @transform_10, window_bounds = array<i64: 1, 16>}, {transform_indices = @transform_11, window_bounds = array<i64: 1, 30, 16>}]} {
    %c0 = arith.constant 0 : index
    %c0_0 = arith.constant 0 : index
    %c0_1 = arith.constant 0 : index
    %0 = vector.load %arg1[%c0, %c0_0, %c0_1] : memref<1x30x8xf32, #tpu.memory_space<vmem>>, vector<1x30x8xf32>
    %1 = vector.shape_cast %0 : vector<1x30x8xf32> to vector<30x8xf32>
    %cst = arith.constant 0.000000e+00 : f32
    %2 = vector.broadcast %cst : f32 to vector<30x24xf32>
    %c0_2 = arith.constant 0 : index
    %c0_3 = arith.constant 0 : index
    %3 = vector.load %arg13[%c0_2, %c0_3] : memref<30x24xf32, #tpu.memory_space<vmem>>, vector<30x24xf32>
    tpu.vector_store %arg13[%c0_2, %c0_3], %2 {strides = array<i32>} : memref<30x24xf32, #tpu.memory_space<vmem>>, vector<30x24xf32>,
    %4 = vector.extract_strided_slice %1 {offsets = [0, 0], sizes = [29, 8], strides = [1, 1]} : vector<30x8xf32> to vector<29x8xf32>
    %c1 = arith.constant 1 : index
    %c0_4 = arith.constant 0 : index
    %5 = vector.load %arg13[%c1, %c0_4] : memref<30x24xf32, #tpu.memory_space<vmem>>, vector<29x8xf32>
    tpu.vector_store %arg13[%c1, %c0_4], %4 {strides = array<i32>} : memref<30x24xf32, #tpu.memory_space<vmem>>, vector<29x8xf32>,
    %c0_5 = arith.constant 0 : index
    %c8 = arith.constant 8 : index
    %6 = vector.load %arg13[%c0_5, %c8] : memref<30x24xf32, #tpu.memory_space<vmem>>, vector<30x8xf32>
    tpu.vector_store %arg13[%c0_5, %c8], %1 {strides = array<i32>} : memref<30x24xf32, #tpu.memory_space<vmem>>, vector<30x8xf32>,
    %7 = vector.extract_strided_slice %1 {offsets = [1, 0], sizes = [29, 8], strides = [1, 1]} : vector<30x8xf32> to vector<29x8xf32>
    %c0_6 = arith.constant 0 : index
    %c16 = arith.constant 16 : index
    %8 = vector.load %arg13[%c0_6, %c16] : memref<30x24xf32, #tpu.memory_space<vmem>>, vector<29x8xf32>
    tpu.vector_store %arg13[%c0_6, %c16], %7 {strides = array<i32>} : memref<30x24xf32, #tpu.memory_space<vmem>>, vector<29x8xf32>,
    %c0_7 = arith.constant 0 : index
    %c0_8 = arith.constant 0 : index
    %9 = vector.load %arg13[%c0_7, %c0_8] : memref<30x24xf32, #tpu.memory_space<vmem>>, vector<30x24xf32>
    %c0_9 = arith.constant 0 : index
    %c0_10 = arith.constant 0 : index
    %10 = vector.load %arg2[%c0_9, %c0_10] : memref<24x8xf32, #tpu.memory_space<vmem>>, vector<24x8xf32>
    %cst_11 = arith.constant dense<0.000000e+00> : vector<30x8xf32>
    %11 = tpu.matmul %9, %10, %cst_11 {dimension_numbers = #tpu.dot_dimension_numbers<[1], [0], [0], [1], [0, 0, 1, 1], [], []>} : vector<30x24xf32>, vector<24x8xf32>, vector<30x8xf32> -> vector<30x8xf32>
    %c0_12 = arith.constant 0 : index
    %c0_13 = arith.constant 0 : index
    %12 = vector.load %arg3[%c0_12, %c0_13] : memref<1x8xf32, #tpu.memory_space<vmem>>, vector<1x8xf32>
    %13 = vector.broadcast %12 : vector<1x8xf32> to vector<30x8xf32>
    %14 = arith.addf %11, %13 : vector<30x8xf32>
    %c0_14 = arith.constant 0 : index
    %c0_15 = arith.constant 0 : index
    %15 = vector.load %arg4[%c0_14, %c0_15] : memref<30x1xf32, #tpu.memory_space<vmem>>, vector<30x1xf32>
    %c0_16 = arith.constant 0 : index
    %c0_17 = arith.constant 0 : index
    %16 = vector.load %arg5[%c0_16, %c0_17] : memref<30x1xf32, #tpu.memory_space<vmem>>, vector<30x1xf32>
    %cst_18 = arith.constant dense<0.000000e+00> : vector<8xf32>
    %17 = vector.multi_reduction <add>, %14, %cst_18 [0] : vector<30x8xf32> to vector<8xf32>
    %18 = vector.shape_cast %17 : vector<8xf32> to vector<1x8xf32>
    %cst_19 = arith.constant 3.000000e+01 : f32
    %19 = vector.broadcast %cst_19 : f32 to vector<1x8xf32>
    %20 = arith.divf %18, %19 : vector<1x8xf32>
    %21 = vector.broadcast %20 : vector<1x8xf32> to vector<30x8xf32>
    %22 = arith.subf %14, %21 : vector<30x8xf32>
    %23 = arith.mulf %22, %22 : vector<30x8xf32>
    %cst_20 = arith.constant dense<0.000000e+00> : vector<8xf32>
    %24 = vector.multi_reduction <add>, %23, %cst_20 [0] : vector<30x8xf32> to vector<8xf32>
    %25 = vector.shape_cast %24 : vector<8xf32> to vector<1x8xf32>
    %cst_21 = arith.constant 3.000000e+01 : f32
    %26 = vector.broadcast %cst_21 : f32 to vector<1x8xf32>
    %27 = arith.divf %25, %26 : vector<1x8xf32>
    %28 = vector.broadcast %20 : vector<1x8xf32> to vector<30x8xf32>
    %29 = arith.subf %14, %28 : vector<30x8xf32>
    %cst_22 = arith.constant 9.99999974E-6 : f32
    %30 = vector.broadcast %cst_22 : f32 to vector<1x8xf32>
    %31 = arith.addf %27, %30 : vector<1x8xf32>
    %32 = math.rsqrt %31 : vector<1x8xf32>
    %33 = vector.broadcast %32 : vector<1x8xf32> to vector<30x8xf32>
    %34 = arith.mulf %29, %33 : vector<30x8xf32>
    %35 = vector.broadcast %15 : vector<30x1xf32> to vector<30x8xf32>
    %36 = arith.mulf %34, %35 : vector<30x8xf32>
    %37 = vector.broadcast %16 : vector<30x1xf32> to vector<30x8xf32>
    %38 = arith.addf %36, %37 : vector<30x8xf32>
    %cst_23 = arith.constant 0.000000e+00 : f32
    %39 = vector.broadcast %cst_23 : f32 to vector<30x8xf32>
    %40 = arith.maximumf %38, %39 : vector<30x8xf32>
    %41 = arith.addf %40, %1 : vector<30x8xf32>
    %cst_24 = arith.constant 0.000000e+00 : f32
    %42 = vector.broadcast %cst_24 : f32 to vector<30x24xf32>
    %c0_25 = arith.constant 0 : index
    %c0_26 = arith.constant 0 : index
    %43 = vector.load %arg13[%c0_25, %c0_26] : memref<30x24xf32, #tpu.memory_space<vmem>>, vector<30x24xf32>
    tpu.vector_store %arg13[%c0_25, %c0_26], %42 {strides = array<i32>} : memref<30x24xf32, #tpu.memory_space<vmem>>, vector<30x24xf32>,
    %44 = vector.extract_strided_slice %41 {offsets = [0, 0], sizes = [28, 8], strides = [1, 1]} : vector<30x8xf32> to vector<28x8xf32>
    %c2 = arith.constant 2 : index
    %c0_27 = arith.constant 0 : index
    %45 = vector.load %arg13[%c2, %c0_27] : memref<30x24xf32, #tpu.memory_space<vmem>>, vector<28x8xf32>
    tpu.vector_store %arg13[%c2, %c0_27], %44 {strides = array<i32>} : memref<30x24xf32, #tpu.memory_space<vmem>>, vector<28x8xf32>,
    %c0_28 = arith.constant 0 : index
    %c8_29 = arith.constant 8 : index
    %46 = vector.load %arg13[%c0_28, %c8_29] : memref<30x24xf32, #tpu.memory_space<vmem>>, vector<30x8xf32>
    tpu.vector_store %arg13[%c0_28, %c8_29], %41 {strides = array<i32>} : memref<30x24xf32, #tpu.memory_space<vmem>>, vector<30x8xf32>,
    %47 = vector.extract_strided_slice %41 {offsets = [2, 0], sizes = [28, 8], strides = [1, 1]} : vector<30x8xf32> to vector<28x8xf32>
    %c0_30 = arith.constant 0 : index
    %c16_31 = arith.constant 16 : index
    %48 = vector.load %arg13[%c0_30, %c16_31] : memref<30x24xf32, #tpu.memory_space<vmem>>, vector<28x8xf32>
    tpu.vector_store %arg13[%c0_30, %c16_31], %47 {strides = array<i32>} : memref<30x24xf32, #tpu.memory_space<vmem>>, vector<28x8xf32>,
    %c0_32 = arith.constant 0 : index
    %c0_33 = arith.constant 0 : index
    %49 = vector.load %arg13[%c0_32, %c0_33] : memref<30x24xf32, #tpu.memory_space<vmem>>, vector<30x24xf32>
    %c0_34 = arith.constant 0 : index
    %c0_35 = arith.constant 0 : index
    %50 = vector.load %arg6[%c0_34, %c0_35] : memref<24x16xf32, #tpu.memory_space<vmem>>, vector<24x16xf32>
    %cst_36 = arith.constant dense<0.000000e+00> : vector<30x16xf32>
    %51 = tpu.matmul %49, %50, %cst_36 {dimension_numbers = #tpu.dot_dimension_numbers<[1], [0], [0], [1], [0, 0, 1, 1], [], []>} : vector<30x24xf32>, vector<24x16xf32>, vector<30x16xf32> -> vector<30x16xf32>
    %c0_37 = arith.constant 0 : index
    %c0_38 = arith.constant 0 : index
    %52 = vector.load %arg7[%c0_37, %c0_38] : memref<1x16xf32, #tpu.memory_space<vmem>>, vector<1x16xf32>
    %53 = vector.broadcast %52 : vector<1x16xf32> to vector<30x16xf32>
    %54 = arith.addf %51, %53 : vector<30x16xf32>
    %c0_39 = arith.constant 0 : index
    %c0_40 = arith.constant 0 : index
    %55 = vector.load %arg8[%c0_39, %c0_40] : memref<30x1xf32, #tpu.memory_space<vmem>>, vector<30x1xf32>
    %c0_41 = arith.constant 0 : index
    %c0_42 = arith.constant 0 : index
    %56 = vector.load %arg9[%c0_41, %c0_42] : memref<30x1xf32, #tpu.memory_space<vmem>>, vector<30x1xf32>
    %c0_43 = arith.constant 0 : index
    %c0_44 = arith.constant 0 : index
    %57 = vector.load %arg10[%c0_43, %c0_44] : memref<8x16xf32, #tpu.memory_space<vmem>>, vector<8x16xf32>
    %c0_45 = arith.constant 0 : index
    %c0_46 = arith.constant 0 : index
    %58 = vector.load %arg11[%c0_45, %c0_46] : memref<1x16xf32, #tpu.memory_space<vmem>>, vector<1x16xf32>
    %cst_47 = arith.constant dense<0.000000e+00> : vector<16xf32>
    %59 = vector.multi_reduction <add>, %54, %cst_47 [0] : vector<30x16xf32> to vector<16xf32>
    %60 = vector.shape_cast %59 : vector<16xf32> to vector<1x16xf32>
    %cst_48 = arith.constant 3.000000e+01 : f32
    %61 = vector.broadcast %cst_48 : f32 to vector<1x16xf32>
    %62 = arith.divf %60, %61 : vector<1x16xf32>
    %63 = vector.broadcast %62 : vector<1x16xf32> to vector<30x16xf32>
    %64 = arith.subf %54, %63 : vector<30x16xf32>
    %65 = arith.mulf %64, %64 : vector<30x16xf32>
    %cst_49 = arith.constant dense<0.000000e+00> : vector<16xf32>
    %66 = vector.multi_reduction <add>, %65, %cst_49 [0] : vector<30x16xf32> to vector<16xf32>
    %67 = vector.shape_cast %66 : vector<16xf32> to vector<1x16xf32>
    %cst_50 = arith.constant 3.000000e+01 : f32
    %68 = vector.broadcast %cst_50 : f32 to vector<1x16xf32>
    %69 = arith.divf %67, %68 : vector<1x16xf32>
    %70 = vector.broadcast %62 : vector<1x16xf32> to vector<30x16xf32>
    %71 = arith.subf %54, %70 : vector<30x16xf32>
    %cst_51 = arith.constant 9.99999974E-6 : f32
    %72 = vector.broadcast %cst_51 : f32 to vector<1x16xf32>
    %73 = arith.addf %69, %72 : vector<1x16xf32>
    %74 = math.rsqrt %73 : vector<1x16xf32>
    %75 = vector.broadcast %74 : vector<1x16xf32> to vector<30x16xf32>
    %76 = arith.mulf %71, %75 : vector<30x16xf32>
    %77 = vector.broadcast %55 : vector<30x1xf32> to vector<30x16xf32>
    %78 = arith.mulf %76, %77 : vector<30x16xf32>
    %79 = vector.broadcast %56 : vector<30x1xf32> to vector<30x16xf32>
    %80 = arith.addf %78, %79 : vector<30x16xf32>
    %cst_52 = arith.constant 0.000000e+00 : f32
    %81 = vector.broadcast %cst_52 : f32 to vector<30x16xf32>
    %82 = arith.maximumf %80, %81 : vector<30x16xf32>
    %cst_53 = arith.constant dense<0.000000e+00> : vector<30x16xf32>
    %83 = tpu.matmul %41, %57, %cst_53 {dimension_numbers = #tpu.dot_dimension_numbers<[1], [0], [0], [1], [0, 0, 1, 1], [], []>} : vector<30x8xf32>, vector<8x16xf32>, vector<30x16xf32> -> vector<30x16xf32>
    %84 = vector.broadcast %58 : vector<1x16xf32> to vector<30x16xf32>
    %85 = arith.addf %83, %84 : vector<30x16xf32>
    %86 = arith.addf %82, %85 : vector<30x16xf32>
    %c0_54 = arith.constant 0 : index
    %c0_55 = arith.constant 0 : index
    %c0_56 = arith.constant 0 : index
    %87 = vector.load %arg12[%c0_54, %c0_55, %c0_56] : memref<1x30x16xf32, #tpu.memory_space<vmem>>, vector<1x30x16xf32>
    %88 = vector.shape_cast %87 : vector<1x30x16xf32> to vector<30x16xf32>
    %89 = vector.shape_cast %86 : vector<30x16xf32> to vector<1x30x16xf32>
    tpu.vector_store %arg12[%c0_54, %c0_55, %c0_56], %89 {strides = array<i32>} : memref<1x30x16xf32, #tpu.memory_space<vmem>>, vector<1x30x16xf32>,
    return
  }
  func.func @transform_0(%arg0: i32) -> (i32, i32, i32) {
    %c0_i32 = arith.constant 0 : i32
    %c0_i32_0 = arith.constant 0 : i32
    %c0_i32_1 = arith.constant 0 : i32
    return %arg0, %c0_i32, %c0_i32_0 : i32, i32, i32
  }
  func.func @transform_1(%arg0: i32) -> (i32, i32) {
    %c0_i32 = arith.constant 0 : i32
    %c0_i32_0 = arith.constant 0 : i32
    %c0_i32_1 = arith.constant 0 : i32
    return %c0_i32, %c0_i32_0 : i32, i32
  }
  func.func @transform_2(%arg0: i32) -> (i32, i32) {
    %c0_i32 = arith.constant 0 : i32
    %c0_i32_0 = arith.constant 0 : i32
    %c0_i32_1 = arith.constant 0 : i32
    return %c0_i32, %c0_i32_0 : i32, i32
  }
  func.func @transform_3(%arg0: i32) -> (i32, i32) {
    %c0_i32 = arith.constant 0 : i32
    %c0_i32_0 = arith.constant 0 : i32
    %c0_i32_1 = arith.constant 0 : i32
    return %c0_i32, %c0_i32_0 : i32, i32
  }
  func.func @transform_4(%arg0: i32) -> (i32, i32) {
    %c0_i32 = arith.constant 0 : i32
    %c0_i32_0 = arith.constant 0 : i32
    %c0_i32_1 = arith.constant 0 : i32
    return %c0_i32, %c0_i32_0 : i32, i32
  }
  func.func @transform_5(%arg0: i32) -> (i32, i32) {
    %c0_i32 = arith.constant 0 : i32
    %c0_i32_0 = arith.constant 0 : i32
    %c0_i32_1 = arith.constant 0 : i32
    return %c0_i32, %c0_i32_0 : i32, i32
  }
  func.func @transform_6(%arg0: i32) -> (i32, i32) {
    %c0_i32 = arith.constant 0 : i32
    %c0_i32_0 = arith.constant 0 : i32
    %c0_i32_1 = arith.constant 0 : i32
    return %c0_i32, %c0_i32_0 : i32, i32
  }
  func.func @transform_7(%arg0: i32) -> (i32, i32) {
    %c0_i32 = arith.constant 0 : i32
    %c0_i32_0 = arith.constant 0 : i32
    %c0_i32_1 = arith.constant 0 : i32
    return %c0_i32, %c0_i32_0 : i32, i32
  }
  func.func @transform_8(%arg0: i32) -> (i32, i32) {
    %c0_i32 = arith.constant 0 : i32
    %c0_i32_0 = arith.constant 0 : i32
    %c0_i32_1 = arith.constant 0 : i32
    return %c0_i32, %c0_i32_0 : i32, i32
  }
  func.func @transform_9(%arg0: i32) -> (i32, i32) {
    %c0_i32 = arith.constant 0 : i32
    %c0_i32_0 = arith.constant 0 : i32
    %c0_i32_1 = arith.constant 0 : i32
    return %c0_i32, %c0_i32_0 : i32, i32
  }
  func.func @transform_10(%arg0: i32) -> (i32, i32) {
    %c0_i32 = arith.constant 0 : i32
    %c0_i32_0 = arith.constant 0 : i32
    %c0_i32_1 = arith.constant 0 : i32
    return %c0_i32, %c0_i32_0 : i32, i32
  }
  func.func @transform_11(%arg0: i32) -> (i32, i32, i32) {
    %c0_i32 = arith.constant 0 : i32
    %c0_i32_0 = arith.constant 0 : i32
    %c0_i32_1 = arith.constant 0 : i32
    return %arg0, %c0_i32, %c0_i32_0 : i32, i32, i32
  }
}

</mosaic_0001>

<llo_original>
// kernel: tpu_custom_call.1
$region0: #{tpu_custom_call.1}
  #allocation0 [shape = 'u32[]', space=smem, size = 0x4, offset = 0x4, fixed_abs, tag = 'smem constant byte address 0x4 - core index']
  #allocation1 [shape = 'u32[72,128]{1,0:T(1,128)}', space=vmem, size = 0x9000, scoped, tag = 'internal scratch']
  #allocation2 [shape = 'f32[30,24]{1,0:T(8,128)}', space=vmem, size = 0x4000, scoped, tag = 'scratch operand']
  %s0 = inlined_call_operand.vmem [shape: f32[2,30,8], index: 0, kind: input, shape index: {}]
  %s1 = inlined_call_operand.vmem [shape: f32[24,8], index: 1, kind: input, shape index: {}]
  %s2 = inlined_call_operand.vmem [shape: f32[1,8], index: 2, kind: input, shape index: {}]
  %s3 = inlined_call_operand.vmem [shape: f32[30,1], index: 3, kind: input, shape index: {}]
  %s4 = inlined_call_operand.vmem [shape: f32[30,1], index: 4, kind: input, shape index: {}]
  %s5 = inlined_call_operand.vmem [shape: f32[24,16], index: 5, kind: input, shape index: {}]
  %s6 = inlined_call_operand.vmem [shape: f32[1,16], index: 6, kind: input, shape index: {}]
  %s7 = inlined_call_operand.vmem [shape: f32[30,1], index: 7, kind: input, shape index: {}]
  %s8 = inlined_call_operand.vmem [shape: f32[30,1], index: 8, kind: input, shape index: {}]
  %s9 = inlined_call_operand.vmem [shape: f32[8,16], index: 9, kind: input, shape index: {}]
  %s10 = inlined_call_operand.vmem [shape: f32[1,16], index: 10, kind: input, shape index: {}]
  %s11 = inlined_call_operand.vmem [shape: f32[2,30,16], index: 11, kind: output, shape index: {}]
  %s12 = sld [smem:[#allocation0]]
  $region77: #{tpu_custom_call.1} parent=0
    _
  %s14 = ssub.s32 1, %s12
  %s15 = scalar_select 0, %s14, %s12
  loop: start=0, step=1, limit=4
  $region2: #{tpu_custom_call.1} parent=0 // loop_pre_header
    _
  $region3: #{tpu_custom_call.1} parent=0 // loop_header
    %s17 = sphi 0, %s21
    %p18 = scmp.ge.s32.totalorder %s17, 4
    %s27 = sphi 0, %s29
    %s30 = sphi 0, %s27
    %s31 = sphi 0, %s30
    %s47 = sphi 0, %s31
    %s51 = sphi 0, %s51
    %s53 = sphi 0, %s51
    %s54 = sphi 0, %s53
    %s68 = sphi 0, %s54
    %s72 = sphi 0, %s72
    %s74 = sphi 0, %s72
    %s75 = sphi 0, %s74
    %s89 = sphi 0, %s75
    %s93 = sphi 0, %s93
    %s95 = sphi 0, %s93
    %s96 = sphi 0, %s95
    %s110 = sphi 0, %s96
    %s114 = sphi 0, %s114
    %s116 = sphi 0, %s114
    %s117 = sphi 0, %s116
    %s131 = sphi 0, %s117
    %s135 = sphi 0, %s135
    %s137 = sphi 0, %s135
    %s138 = sphi 0, %s137
    %s152 = sphi 0, %s138
    %s156 = sphi 0, %s156
    %s158 = sphi 0, %s156
    %s159 = sphi 0, %s158
    %s173 = sphi 0, %s159
    %s177 = sphi 0, %s177
    %s179 = sphi 0, %s177
    %s180 = sphi 0, %s179
    %s194 = sphi 0, %s180
    %s198 = sphi 0, %s198
    %s200 = sphi 0, %s198
    %s201 = sphi 0, %s200
    %s215 = sphi 0, %s201
    %s219 = sphi 0, %s219
    %s221 = sphi 0, %s219
    %s222 = sphi 0, %s221
    %s236 = sphi 0, %s222
    %s240 = sphi 0, %s240
    %s242 = sphi 0, %s240
    %s243 = sphi 0, %s242
    %s257 = sphi 0, %s243
    %s263 = sphi 0, %s265
    %s266 = sphi 0, %s263
    %s267 = sphi 0, %s266
    %s283 = sphi 0, %s267
  $region4: #{tpu_custom_call.1} parent=0 // loop_header_branch
    %20 = sbr.rel (%p18) target = $region8
  $region5: #{tpu_custom_call.1} parent=0 // loop_body
    %s22 = ssub.s32 %s17, 1
    %s23 = ssub.s32 %s17, 2
    %s24 = sadd.s32 %s17, 1
    %s25 = ssub.s32 %s17, %s24
    %p26 = scmp.eq.s32.totalorder %s25, 0
    %s28 = sadd.s32 %s27, 1
    %s29 = scalar_select %p26, %s27, %s28
    %p32 = pneg %p26
    %p33 = scmp.eq.s32.totalorder %s17, 1
    %p34 = por %p32, %p33
    %p35 = scmp.ne.s32.totalorder %s27, %s30
    %p36 = scmp.eq.s32.totalorder %s17, 0
    %p37 = por %p35, %p36
    %p38 = scmp.ne.s32.totalorder %s27, %s30
    %p39 = scmp.eq.s32.totalorder %s22, 1
    %p40 = por %p38, %p39
    %p41 = scmp.ne.s32.totalorder %s30, %s31
    %p42 = scmp.eq.s32.totalorder %s22, 0
    %p43 = por %p41, %p42
    %p44 = scmp.ne.s32.totalorder %s30, %s31
    %p45 = scmp.eq.s32.totalorder %s23, 1
    %p46 = por %p44, %p45
    %p48 = scmp.ne.s32.totalorder %s31, %s47
    %p49 = scmp.eq.s32.totalorder %s23, 0
    %p50 = por %p48, %p49
    %s52 = sadd.s32 %s51, 1
    %p55 = scmp.eq.s32.totalorder %s17, 1
    %p56 = scmp.ne.s32.totalorder %s51, %s53
    %p57 = scmp.eq.s32.totalorder %s17, 0
    %p58 = por %p56, %p57
    %p59 = scmp.ne.s32.totalorder %s51, %s53
    %p60 = scmp.eq.s32.totalorder %s22, 1
    %p61 = por %p59, %p60
    %p62 = scmp.ne.s32.totalorder %s53, %s54
    %p63 = scmp.eq.s32.totalorder %s22, 0
    %p64 = por %p62, %p63
    %p65 = scmp.ne.s32.totalorder %s53, %s54
    %p66 = scmp.eq.s32.totalorder %s23, 1
    %p67 = por %p65, %p66
    %p69 = scmp.ne.s32.totalorder %s54, %s68
    %p70 = scmp.eq.s32.totalorder %s23, 0
    %p71 = por %p69, %p70
    %s73 = sadd.s32 %s72, 1
    %p76 = scmp.eq.s32.totalorder %s17, 1
    %p77 = scmp.ne.s32.totalorder %s72, %s74
    %p78 = scmp.eq.s32.totalorder %s17, 0
    %p79 = por %p77, %p78
    %p80 = scmp.ne.s32.totalorder %s72, %s74
    %p81 = scmp.eq.s32.totalorder %s22, 1
    %p82 = por %p80, %p81
    %p83 = scmp.ne.s32.totalorder %s74, %s75
    %p84 = scmp.eq.s32.totalorder %s22, 0
    %p85 = por %p83, %p84
    %p86 = scmp.ne.s32.totalorder %s74, %s75
    %p87 = scmp.eq.s32.totalorder %s23, 1
    %p88 = por %p86, %p87
    %p90 = scmp.ne.s32.totalorder %s75, %s89
    %p91 = scmp.eq.s32.totalorder %s23, 0
    %p92 = por %p90, %p91
    %s94 = sadd.s32 %s93, 1
    %p97 = scmp.eq.s32.totalorder %s17, 1
    %p98 = scmp.ne.s32.totalorder %s93, %s95
    %p99 = scmp.eq.s32.totalorder %s17, 0
    %p100 = por %p98, %p99
    %p101 = scmp.ne.s32.totalorder %s93, %s95
    %p102 = scmp.eq.s32.totalorder %s22, 1
    %p103 = por %p101, %p102
    %p104 = scmp.ne.s32.totalorder %s95, %s96
    %p105 = scmp.eq.s32.totalorder %s22, 0
    %p106 = por %p104, %p105
    %p107 = scmp.ne.s32.totalorder %s95, %s96
    %p108 = scmp.eq.s32.totalorder %s23, 1
    %p109 = por %p107, %p108
    %p111 = scmp.ne.s32.totalorder %s96, %s110
    %p112 = scmp.eq.s32.totalorder %s23, 0
    %p113 = por %p111, %p112
    %s115 = sadd.s32 %s114, 1
    %p118 = scmp.eq.s32.totalorder %s17, 1
    %p119 = scmp.ne.s32.totalorder %s114, %s116
    %p120 = scmp.eq.s32.totalorder %s17, 0
    %p121 = por %p119, %p120
    %p122 = scmp.ne.s32.totalorder %s114, %s116
    %p123 = scmp.eq.s32.totalorder %s22, 1
    %p124 = por %p122, %p123
    %p125 = scmp.ne.s32.totalorder %s116, %s117
    %p126 = scmp.eq.s32.totalorder %s22, 0
    %p127 = por %p125, %p126
    %p128 = scmp.ne.s32.totalorder %s116, %s117
    %p129 = scmp.eq.s32.totalorder %s23, 1
    %p130 = por %p128, %p129
    %p132 = scmp.ne.s32.totalorder %s117, %s131
    %p133 = scmp.eq.s32.totalorder %s23, 0
    %p134 = por %p132, %p133
    %s136 = sadd.s32 %s135, 1
    %p139 = scmp.eq.s32.totalorder %s17, 1
    %p140 = scmp.ne.s32.totalorder %s135, %s137
    %p141 = scmp.eq.s32.totalorder %s17, 0
    %p142 = por %p140, %p141
    %p143 = scmp.ne.s32.totalorder %s135, %s137
    %p144 = scmp.eq.s32.totalorder %s22, 1
    %p145 = por %p143, %p144
    %p146 = scmp.ne.s32.totalorder %s137, %s138
    %p147 = scmp.eq.s32.totalorder %s22, 0
    %p148 = por %p146, %p147
    %p149 = scmp.ne.s32.totalorder %s137, %s138
    %p150 = scmp.eq.s32.totalorder %s23, 1
    %p151 = por %p149, %p150
    %p153 = scmp.ne.s32.totalorder %s138, %s152
    %p154 = scmp.eq.s32.totalorder %s23, 0
    %p155 = por %p153, %p154
    %s157 = sadd.s32 %s156, 1
    %p160 = scmp.eq.s32.totalorder %s17, 1
    %p161 = scmp.ne.s32.totalorder %s156, %s158
    %p162 = scmp.eq.s32.totalorder %s17, 0
    %p163 = por %p161, %p162
    %p164 = scmp.ne.s32.totalorder %s156, %s158
    %p165 = scmp.eq.s32.totalorder %s22, 1
    %p166 = por %p164, %p165
    %p167 = scmp.ne.s32.totalorder %s158, %s159
    %p168 = scmp.eq.s32.totalorder %s22, 0
    %p169 = por %p167, %p168
    %p170 = scmp.ne.s32.totalorder %s158, %s159
    %p171 = scmp.eq.s32.totalorder %s23, 1
    %p172 = por %p170, %p171
    %p174 = scmp.ne.s32.totalorder %s159, %s173
    %p175 = scmp.eq.s32.totalorder %s23, 0
    %p176 = por %p174, %p175
    %s178 = sadd.s32 %s177, 1
    %p181 = scmp.eq.s32.totalorder %s17, 1
    %p182 = scmp.ne.s32.totalorder %s177, %s179
    %p183 = scmp.eq.s32.totalorder %s17, 0
    %p184 = por %p182, %p183
    %p185 = scmp.ne.s32.totalorder %s177, %s179
    %p186 = scmp.eq.s32.totalorder %s22, 1
    %p187 = por %p185, %p186
    %p188 = scmp.ne.s32.totalorder %s179, %s180
    %p189 = scmp.eq.s32.totalorder %s22, 0
    %p190 = por %p188, %p189
    %p191 = scmp.ne.s32.totalorder %s179, %s180
    %p192 = scmp.eq.s32.totalorder %s23, 1
    %p193 = por %p191, %p192
    %p195 = scmp.ne.s32.totalorder %s180, %s194
    %p196 = scmp.eq.s32.totalorder %s23, 0
    %p197 = por %p195, %p196
    %s199 = sadd.s32 %s198, 1
    %p202 = scmp.eq.s32.totalorder %s17, 1
    %p203 = scmp.ne.s32.totalorder %s198, %s200
    %p204 = scmp.eq.s32.totalorder %s17, 0
    %p205 = por %p203, %p204
    %p206 = scmp.ne.s32.totalorder %s198, %s200
    %p207 = scmp.eq.s32.totalorder %s22, 1
    %p208 = por %p206, %p207
    %p209 = scmp.ne.s32.totalorder %s200, %s201
    %p210 = scmp.eq.s32.totalorder %s22, 0
    %p211 = por %p209, %p210
    %p212 = scmp.ne.s32.totalorder %s200, %s201
    %p213 = scmp.eq.s32.totalorder %s23, 1
    %p214 = por %p212, %p213
    %p216 = scmp.ne.s32.totalorder %s201, %s215
    %p217 = scmp.eq.s32.totalorder %s23, 0
    %p218 = por %p216, %p217
    %s220 = sadd.s32 %s219, 1
    %p223 = scmp.eq.s32.totalorder %s17, 1
    %p224 = scmp.ne.s32.totalorder %s219, %s221
    %p225 = scmp.eq.s32.totalorder %s17, 0
    %p226 = por %p224, %p225
    %p227 = scmp.ne.s32.totalorder %s219, %s221
    %p228 = scmp.eq.s32.totalorder %s22, 1
    %p229 = por %p227, %p228
    %p230 = scmp.ne.s32.totalorder %s221, %s222
    %p231 = scmp.eq.s32.totalorder %s22, 0
    %p232 = por %p230, %p231
    %p233 = scmp.ne.s32.totalorder %s221, %s222
    %p234 = scmp.eq.s32.totalorder %s23, 1
    %p235 = por %p233, %p234
    %p237 = scmp.ne.s32.totalorder %s222, %s236
    %p238 = scmp.eq.s32.totalorder %s23, 0
    %p239 = por %p237, %p238
    %s241 = sadd.s32 %s240, 1
    %p244 = scmp.eq.s32.totalorder %s17, 1
    %p245 = scmp.ne.s32.totalorder %s240, %s242
    %p246 = scmp.eq.s32.totalorder %s17, 0
    %p247 = por %p245, %p246
    %p248 = scmp.ne.s32.totalorder %s240, %s242
    %p249 = scmp.eq.s32.totalorder %s22, 1
    %p250 = por %p248, %p249
    %p251 = scmp.ne.s32.totalorder %s242, %s243
    %p252 = scmp.eq.s32.totalorder %s22, 0
    %p253 = por %p251, %p252
    %p254 = scmp.ne.s32.totalorder %s242, %s243
    %p255 = scmp.eq.s32.totalorder %s23, 1
    %p256 = por %p254, %p255
    %p258 = scmp.ne.s32.totalorder %s243, %s257
    %p259 = scmp.eq.s32.totalorder %s23, 0
    %p260 = por %p258, %p259
    %s261 = ssub.s32 %s17, %s24
    %p262 = scmp.eq.s32.totalorder %s261, 0
    %s264 = sadd.s32 %s263, 1
    %s265 = scalar_select %p262, %s263, %s264
    %p268 = pneg %p262
    %p269 = scmp.eq.s32.totalorder %s17, 1
    %p270 = por %p268, %p269
    %p271 = scmp.ne.s32.totalorder %s263, %s266
    %p272 = scmp.eq.s32.totalorder %s17, 0
    %p273 = por %p271, %p272
    %p274 = scmp.ne.s32.totalorder %s263, %s266
    %p275 = scmp.eq.s32.totalorder %s22, 1
    %p276 = por %p274, %p275
    %p277 = scmp.ne.s32.totalorder %s266, %s267
    %p278 = scmp.eq.s32.totalorder %s22, 0
    %p279 = por %p277, %p278
    %p280 = scmp.ne.s32.totalorder %s266, %s267
    %p281 = scmp.eq.s32.totalorder %s23, 1
    %p282 = por %p280, %p281
    %p284 = scmp.ne.s32.totalorder %s267, %s283
    %p285 = scmp.eq.s32.totalorder %s23, 0
    %p286 = por %p284, %p285
    %p287 = scmp.le.s32.totalorder 1, %s17
    %p288 = scmp.lt.s32.totalorder %s17, 3
    %p289 = pnand %p287, %p288
    %p290 = pneg %p289
    // Predicated region
    $region9: #{tpu_custom_call.1} parent=5 // pred_check
      _
    $region10: #{tpu_custom_call.1} parent=5 // pred_check_branch
      %292 = sbr.rel (%p289) target = $region12
    $region11: #{tpu_custom_call.1} parent=5 // pred_region
      %s293 = ssub.s32 %s17, 1
      // Predicated region
      $region13: #{tpu_custom_call.1} parent=11 // pred_check
        %p294 = pneg %p64
      $region14: #{tpu_custom_call.1} parent=11 // pred_check_branch
        %296 = sbr.rel (%p294) target = $region16
      $region15: #{tpu_custom_call.1} parent=11 // pred_region
        _
      $region16: #{tpu_custom_call.1} parent=11 // pred_fallthru
        _
      // Predicated region
      $region17: #{tpu_custom_call.1} parent=11 // pred_check
        %p297 = pneg %p85
      $region18: #{tpu_custom_call.1} parent=11 // pred_check_branch
        %299 = sbr.rel (%p297) target = $region20
      $region19: #{tpu_custom_call.1} parent=11 // pred_region
        _
      $region20: #{tpu_custom_call.1} parent=11 // pred_fallthru
        _
      // Predicated region
      $region21: #{tpu_custom_call.1} parent=11 // pred_check
        %p300 = pneg %p106
      $region22: #{tpu_custom_call.1} parent=11 // pred_check_branch
        %302 = sbr.rel (%p300) target = $region24
      $region23: #{tpu_custom_call.1} parent=11 // pred_region
        _
      $region24: #{tpu_custom_call.1} parent=11 // pred_fallthru
        _
      // Predicated region
      $region25: #{tpu_custom_call.1} parent=11 // pred_check
        %p303 = pneg %p127
      $region26: #{tpu_custom_call.1} parent=11 // pred_check_branch
        %305 = sbr.rel (%p303) target = $region28
      $region27: #{tpu_custom_call.1} parent=11 // pred_region
        _
      $region28: #{tpu_custom_call.1} parent=11 // pred_fallthru
        _
      // Predicated region
      $region29: #{tpu_custom_call.1} parent=11 // pred_check
        %p306 = pneg %p148
      $region30: #{tpu_custom_call.1} parent=11 // pred_check_branch
        %308 = sbr.rel (%p306) target = $region32
      $region31: #{tpu_custom_call.1} parent=11 // pred_region
        _
      $region32: #{tpu_custom_call.1} parent=11 // pred_fallthru
        _
      // Predicated region
      $region33: #{tpu_custom_call.1} parent=11 // pred_check
        %p309 = pneg %p169
      $region34: #{tpu_custom_call.1} parent=11 // pred_check_branch
        %311 = sbr.rel (%p309) target = $region36
      $region35: #{tpu_custom_call.1} parent=11 // pred_region
        _
      $region36: #{tpu_custom_call.1} parent=11 // pred_fallthru
        _
      // Predicated region
      $region37: #{tpu_custom_call.1} parent=11 // pred_check
        %p312 = pneg %p190
      $region38: #{tpu_custom_call.1} parent=11 // pred_check_branch
        %314 = sbr.rel (%p312) target = $region40
      $region39: #{tpu_custom_call.1} parent=11 // pred_region
        _
      $region40: #{tpu_custom_call.1} parent=11 // pred_fallthru
        _
      // Predicated region
      $region41: #{tpu_custom_call.1} parent=11 // pred_check
        %p315 = pneg %p211
      $region42: #{tpu_custom_call.1} parent=11 // pred_check_branch
        %317 = sbr.rel (%p315) target = $region44
      $region43: #{tpu_custom_call.1} parent=11 // pred_region
        _
      $region44: #{tpu_custom_call.1} parent=11 // pred_fallthru
        _
      // Predicated region
      $region45: #{tpu_custom_call.1} parent=11 // pred_check
        %p318 = pneg %p232
      $region46: #{tpu_custom_call.1} parent=11 // pred_check_branch
        %320 = sbr.rel (%p318) target = $region48
      $region47: #{tpu_custom_call.1} parent=11 // pred_region
        _
      $region48: #{tpu_custom_call.1} parent=11 // pred_fallthru
        _
      // Predicated region
      $region49: #{tpu_custom_call.1} parent=11 // pred_check
        %p321 = pneg %p253
      $region50: #{tpu_custom_call.1} parent=11 // pred_check_branch
        %323 = sbr.rel (%p321) target = $region52
      $region51: #{tpu_custom_call.1} parent=11 // pred_region
        _
      $region52: #{tpu_custom_call.1} parent=11 // pred_fallthru
        _
    $region12: #{tpu_custom_call.1} parent=5 // pred_fallthru
      _
    %p324 = scmp.lt.s32.totalorder %s17, 2
    // Predicated region
    $region53: #{tpu_custom_call.1} parent=5 // pred_check
      %p325 = pneg %p324
    $region54: #{tpu_custom_call.1} parent=5 // pred_check_branch
      %327 = sbr.rel (%p325) target = $region56
    $region55: #{tpu_custom_call.1} parent=5 // pred_region
      // Predicated region
      $region57: #{tpu_custom_call.1} parent=55 // pred_check
        %p328 = pneg %p37
      $region58: #{tpu_custom_call.1} parent=55 // pred_check_branch
        %330 = sbr.rel (%p328) target = $region60
      $region59: #{tpu_custom_call.1} parent=55 // pred_region
        %p331 = scmp.lt.s32.totalorder %s17, 1
        %s332 = scalar_select %p331, %s17, 1
        %s333 = smul.addr %s332, 4
        %s334 = smul.addr %s333, 8
        %s335 = scalar_lea.vmem %s0, %s334
      $region60: #{tpu_custom_call.1} parent=55 // pred_fallthru
        _
    $region56: #{tpu_custom_call.1} parent=5 // pred_fallthru
      _
    %p336 = scmp.le.s32.totalorder 1, %s17
    %p337 = scmp.lt.s32.totalorder %s17, 3
    %p338 = pnand %p336, %p337
    %p339 = pneg %p338
    // Predicated region
    $region61: #{tpu_custom_call.1} parent=5 // pred_check
      _
    $region62: #{tpu_custom_call.1} parent=5 // pred_check_branch
      %341 = sbr.rel (%p338) target = $region64
    $region63: #{tpu_custom_call.1} parent=5 // pred_region
      %s342 = ssub.s32 %s17, 1
      %p343 = scmp.lt.s32.totalorder %s22, 1
      %s344 = scalar_select %p343, %s22, 1
      %s345 = smul.addr %s344, 4
      %s346 = smul.addr %s345, 8
      %s347 = scalar_lea.vmem %s0, %s346
      %p348 = pneg %p43
      %p349 = pneg %p40
      %p350 = pneg %p64
      %p351 = pneg %p61
      %p352 = pneg %p85
      %p353 = pneg %p82
      %p354 = pneg %p106
      %p355 = pneg %p103
      %p356 = pneg %p127
      %p357 = pneg %p124
      %p358 = pneg %p148
      %p359 = pneg %p145
      %p360 = pneg %p169
      %p361 = pneg %p166
      %p362 = pneg %p190
      %p363 = pneg %p187
      %p364 = pneg %p211
      %p365 = pneg %p208
      %p366 = pneg %p232
      %p367 = pneg %p229
      %p368 = pneg %p253
      %p369 = pneg %p250
      %p370 = pneg %p279
      %p371 = pneg %p276
      %p372 = scmp.lt.s32.totalorder %s22, 1
      %s373 = scalar_select %p372, %s22, 1
      %s374 = smul.addr %s373, 4
      %s375 = smul.addr %s374, 8
      %s376 = scalar_lea.vmem %s11, %s375
      %p377 = scmp.lt.s32.totalorder %s22, 1
      %s378 = scalar_select %p377, %s22, 1
      %s379 = smul.addr %s378, 4
      %s380 = smul.addr %s379, 8
      %s381 = scalar_lea.vmem %s0, %s380
      %p382 = scmp.lt.s32.totalorder %s22, 1
      %s383 = scalar_select %p382, %s22, 1
      %s384 = smul.addr %s383, 4
      %s385 = smul.addr %s384, 8
      %s386 = scalar_lea.vmem %s11, %s385
      %v387 = vld [vmem:[%s381] sm:$0xff]
      %v388 = vld [vmem:[%s381 + $0x8] sm:$0xff]
      %v389 = vld [vmem:[%s381 + $0x10] sm:$0xff]
      %v390 = vld [vmem:[%s381 + $0x18] sm:$0x3f]
      %vm391 = vcmask 195584
      %392 = vst.msk [vmem:[#allocation2] sm:$0xff] %vm391, 0.0
      %393 = vst.msk [vmem:[#allocation2 + $0x8] sm:$0xff] %vm391, 0.0
      %394 = vst.msk [vmem:[#allocation2 + $0x10] sm:$0xff] %vm391, 0.0
      %vm395 = vcmask 193536
      %396 = vst.msk [vmem:[#allocation2 + $0x18] sm:$0x3f] %vm395, 0.0
      %vm397 = vcmask 64512
      %398 = vst.msk [vmem:[#allocation2 + $0x1] sm:$0xff] %vm397, %v387
      %399 = vst.msk [vmem:[#allocation2 + $0x9] sm:$0xff] %vm397, %v388
      %400 = vst.msk [vmem:[#allocation2 + $0x11] sm:$0xff] %vm397, %v389
      %vm401 = vcmask 61440
      %402 = vst.msk [vmem:[#allocation2 + $0x19] sm:$0x1f] %vm401, %v390
      %407 = vrot.lane.b32.xlu0 %v387, 8
      %v408 = vpop.permute.xlu0 %407
      %409 = vrot.lane.b32.xlu0 %v388, 8
      %v410 = vpop.permute.xlu0 %409
      %411 = vrot.lane.b32.xlu0 %v389, 8
      %v412 = vpop.permute.xlu0 %411
      %413 = vrot.lane.b32.xlu0 %v390, 8
      %v414 = vpop.permute.xlu0 %413
      %vm419 = vcmask 130112
      %420 = vst.msk [vmem:[#allocation2] sm:$0xff] %vm419, %v408
      %421 = vst.msk [vmem:[#allocation2 + $0x8] sm:$0xff] %vm419, %v410
      %422 = vst.msk [vmem:[#allocation2 + $0x10] sm:$0xff] %vm419, %v412
      %vm423 = vcmask 128064
      %424 = vst.msk [vmem:[#allocation2 + $0x18] sm:$0x3f] %vm423, %v414
      %425 = vrot.lane.b32.xlu0 %v387, 16
      %v426 = vpop.permute.xlu0 %425
      %427 = vrot.lane.b32.xlu0 %v388, 16
      %v428 = vpop.permute.xlu0 %427
      %429 = vrot.lane.b32.xlu0 %v389, 16
      %v430 = vpop.permute.xlu0 %429
      %431 = vrot.lane.b32.xlu0 %v390, 16
      %v432 = vpop.permute.xlu0 %431
      %vm437 = vcmask 195713
      %438 = vst.msk [vmem:[#allocation2 - $0x1] sm:$0xfe] %vm437, %v426
      %vm439 = vcmask 195712
      %440 = vst.msk [vmem:[#allocation2 + $0x7] sm:$0xff] %vm439, %v428
      %441 = vst.msk [vmem:[#allocation2 + $0xf] sm:$0xff] %vm439, %v430
      %vm442 = vcmask 193664
      %443 = vst.msk [vmem:[#allocation2 + $0x17] sm:$0x3f] %vm442, %v432
      %v444 = vld [vmem:[#allocation2] sm:$0xff]
      %v445 = vld [vmem:[#allocation2 + $0x8] sm:$0xff]
      %v446 = vld [vmem:[#allocation2 + $0x10] sm:$0xff]
      %v447 = vld [vmem:[#allocation2 + $0x18] sm:$0x3f]
      %v448 = vld [vmem:[%s1] sm:$0xff]
      %v449 = vld [vmem:[%s1 + $0x8] sm:$0xff]
      %v450 = vld [vmem:[%s1 + $0x10] sm:$0xff]
      %v451 = vld [vmem:[%s2] sm:$0x1]
      %v453 = vperm.slane %v451, 0
      %v456 = vsel %vm391, %v444, 0
      %v459 = vsel %vm391, %v445, 0
      %v462 = vsel %vm391, %v446, 0
      %v465 = vsel %vm391, %v447, 0
      %467 = vmatpush.msra.mxu0 0.0
      %468 = vmatpush.msra.mxu0 0.0
      %469 = vmatpush.msra.mxu0 0.0
      %470 = vmatpush.msra.mxu0 0.0
      %471 = vmatpush.msra.mxu0 0.0
      %472 = vmatpush.msra.mxu0 0.0
      %473 = vmatpush.msra.mxu0 0.0
      %474 = vmatpush.msra.mxu0 0.0
      %475 = vmatpush.msra.mxu0 0.0
      %476 = vmatpush.msra.mxu0 0.0
      %477 = vmatpush.msra.mxu0 0.0
      %478 = vmatpush.msra.mxu0 0.0
      %479 = vmatpush.msra.mxu0 0.0
      %480 = vmatpush.msra.mxu0 %v450
      %481 = vmatpush.msra.mxu0 %v449
      %482 = vmatpush.msra.mxu0 %v448
      %483 = vmatmul.f32.gmra.mxu0 %v456
      %v484 = vpop.f32.mrf.mxu0
      %v485 = vadd.f32 %v453, %v484
      %486 = vmatmul.f32.gmra.mxu0 %v459
      %v487 = vpop.f32.mrf.mxu0
      %v488 = vadd.f32 %v453, %v487
      %489 = vmatmul.f32.gmra.mxu0 %v462
      %v490 = vpop.f32.mrf.mxu0
      %v491 = vadd.f32 %v453, %v490
      %492 = vmatmul.f32.gmra.mxu0 %v465
      %v493 = vpop.f32.mrf.mxu0
      %v494 = vadd.f32 %v453, %v493
      %495 = vdwg.mxu0
      %v496 = vld [vmem:[%s3] sm:$0xff]
      %v497 = vld [vmem:[%s3 + $0x8] sm:$0xff]
      %v498 = vld [vmem:[%s3 + $0x10] sm:$0xff]
      %v499 = vld [vmem:[%s3 + $0x18] sm:$0x3f]
      %v500 = vld [vmem:[%s4] sm:$0xff]
      %v501 = vld [vmem:[%s4 + $0x8] sm:$0xff]
      %v502 = vld [vmem:[%s4 + $0x10] sm:$0xff]
      %v503 = vld [vmem:[%s4 + $0x18] sm:$0x3f]
      %v504 = vsel %vm397, %v485, 0.0
      %v505 = vsel %vm397, %v488, 0.0
      %v506 = vadd.f32 %v504, %v505
      %v507 = vsel %vm397, %v491, 0.0
      %v508 = vadd.f32 %v506, %v507
      %vm509 = vcmask 62464
      %v510 = vsel %vm509, %v494, 0.0
      %v511 = vadd.f32 %v508, %v510
      %v512 = vrot.slane %v511, 4
      %v513 = vadd.f32 %v511, %v512
      %v514 = vrot.slane %v513, 2
      %v515 = vadd.f32 %v513, %v514
      %v516 = vrot.slane %v515, 1
      %v517 = vadd.f32 %v515, %v516
      %v518 = vrcp.pop 30.0
      %v519 = vmul.f32 30.0, %v518
      %v520 = vsub.f32 1.0, %v519
      %v521 = vmul.f32 %v518, %v520
      %v522 = vadd.f32 %v518, %v521
      %vm523 = vweird.f32 %v518
      %v524 = vsel %vm523, %v518, %v522
      %v525 = vmul.f32 %v517, %v524
      %v526 = vsub.f32 %v485, %v525
      %v527 = vsub.f32 %v488, %v525
      %v528 = vsub.f32 %v491, %v525
      %v529 = vsub.f32 %v494, %v525
      %v530 = vmul.f32 %v526, %v526
      %v531 = vmul.f32 %v527, %v527
      %v532 = vmul.f32 %v528, %v528
      %v533 = vmul.f32 %v529, %v529
      %v534 = vsel %vm397, %v530, 0.0
      %v535 = vsel %vm397, %v531, 0.0
      %v536 = vadd.f32 %v534, %v535
      %v537 = vsel %vm397, %v532, 0.0
      %v538 = vadd.f32 %v536, %v537
      %v539 = vsel %vm509, %v533, 0.0
      %v540 = vadd.f32 %v538, %v539
      %v541 = vrot.slane %v540, 4
      %v542 = vadd.f32 %v540, %v541
      %v543 = vrot.slane %v542, 2
      %v544 = vadd.f32 %v542, %v543
      %v545 = vrot.slane %v544, 1
      %v546 = vadd.f32 %v544, %v545
      %v547 = vmul.f32 %v546, %v524
      %v548 = vadd.f32 %v547, 1e-05
      %v549 = vrsqrt.pop %v548
      %v550 = vmul.f32 %v549, %v548
      %v551 = vmul.f32 %v550, %v549
      %v552 = vmul.f32 0.5, %v551
      %v553 = vsub.f32 1.5, %v552
      %v554 = vmul.f32 %v549, %v553
      %vm555 = vweird.f32 %v548
      %vm556 = vweird.f32 %v549
      %vm557 = vmor %vm555, %vm556
      %v558 = vsel %vm557, %v549, %v554
      %v559 = vmul.f32 %v526, %v558
      %v560 = vmul.f32 %v527, %v558
      %v561 = vmul.f32 %v528, %v558
      %v562 = vmul.f32 %v529, %v558
      %564 = vset.pattern.permute.xlu0 0
      %565 = vperm.xlu0 %564, %v496
      %v566 = vpop.permute.xlu0 %565
      %569 = vset.pattern.permute.xlu0 0
      %570 = vperm.xlu0 %569, %v497
      %v571 = vpop.permute.xlu0 %570
      %574 = vset.pattern.permute.xlu0 0
      %575 = vperm.xlu0 %574, %v498
      %v576 = vpop.permute.xlu0 %575
      %579 = vset.pattern.permute.xlu0 0
      %580 = vperm.xlu0 %579, %v499
      %v581 = vpop.permute.xlu0 %580
      %v583 = vmul.f32 %v559, %v566
      %v584 = vmul.f32 %v560, %v571
      %v585 = vmul.f32 %v561, %v576
      %v586 = vmul.f32 %v562, %v581
      %588 = vset.pattern.permute.xlu0 0
      %589 = vperm.xlu0 %588, %v500
      %v590 = vpop.permute.xlu0 %589
      %593 = vset.pattern.permute.xlu0 0
      %594 = vperm.xlu0 %593, %v501
      %v595 = vpop.permute.xlu0 %594
      %598 = vset.pattern.permute.xlu0 0
      %599 = vperm.xlu0 %598, %v502
      %v600 = vpop.permute.xlu0 %599
      %603 = vset.pattern.permute.xlu0 0
      %604 = vperm.xlu0 %603, %v503
      %v605 = vpop.permute.xlu0 %604
      %v607 = vadd.f32 %v583, %v590
      %v608 = vadd.f32 %v584, %v595
      %v609 = vadd.f32 %v585, %v600
      %v610 = vadd.f32 %v586, %v605
      %v611 = vmax.f32 %v607, 0.0
      %v612 = vmax.f32 %v608, 0.0
      %v613 = vmax.f32 %v609, 0.0
      %v614 = vmax.f32 %v610, 0.0
      %v615 = vadd.f32 %v611, %v387
      %v616 = vadd.f32 %v612, %v388
      %v617 = vadd.f32 %v613, %v389
      %v618 = vadd.f32 %v614, %v390
      %619 = vst.msk [vmem:[#allocation2] sm:$0xff] %vm391, 0.0
      %620 = vst.msk [vmem:[#allocation2 + $0x8] sm:$0xff] %vm391, 0.0
      %621 = vst.msk [vmem:[#allocation2 + $0x10] sm:$0xff] %vm391, 0.0
      %622 = vst.msk [vmem:[#allocation2 + $0x18] sm:$0x3f] %vm395, 0.0
      %623 = vst.msk [vmem:[#allocation2 + $0x2] sm:$0xff] %vm397, %v615
      %624 = vst.msk [vmem:[#allocation2 + $0xa] sm:$0xff] %vm397, %v616
      %625 = vst.msk [vmem:[#allocation2 + $0x12] sm:$0xff] %vm397, %v617
      %vm626 = vcmask 60416
      %627 = vst.msk [vmem:[#allocation2 + $0x1a] sm:$0xf] %vm626, %v618
      %632 = vrot.lane.b32.xlu0 %v615, 8
      %v633 = vpop.permute.xlu0 %632
      %634 = vrot.lane.b32.xlu0 %v616, 8
      %v635 = vpop.permute.xlu0 %634
      %636 = vrot.lane.b32.xlu0 %v617, 8
      %v637 = vpop.permute.xlu0 %636
      %638 = vrot.lane.b32.xlu0 %v618, 8
      %v639 = vpop.permute.xlu0 %638
      %644 = vst.msk [vmem:[#allocation2] sm:$0xff] %vm419, %v633
      %645 = vst.msk [vmem:[#allocation2 + $0x8] sm:$0xff] %vm419, %v635
      %646 = vst.msk [vmem:[#allocation2 + $0x10] sm:$0xff] %vm419, %v637
      %647 = vst.msk [vmem:[#allocation2 + $0x18] sm:$0x3f] %vm423, %v639
      %648 = vrot.lane.b32.xlu0 %v615, 16
      %v649 = vpop.permute.xlu0 %648
      %650 = vrot.lane.b32.xlu0 %v616, 16
      %v651 = vpop.permute.xlu0 %650
      %652 = vrot.lane.b32.xlu0 %v617, 16
      %v653 = vpop.permute.xlu0 %652
      %654 = vrot.lane.b32.xlu0 %v618, 16
      %v655 = vpop.permute.xlu0 %654
      %vm660 = vcmask 195714
      %661 = vst.msk [vmem:[#allocation2 - $0x2] sm:$0xfc] %vm660, %v649
      %662 = vst.msk [vmem:[#allocation2 + $0x6] sm:$0xff] %vm439, %v651
      %663 = vst.msk [vmem:[#allocation2 + $0xe] sm:$0xff] %vm439, %v653
      %664 = vst.msk [vmem:[#allocation2 + $0x16] sm:$0x3f] %vm442, %v655
      %v665 = vld [vmem:[#allocation2] sm:$0xff]
      %v666 = vld [vmem:[#allocation2 + $0x8] sm:$0xff]
      %v667 = vld [vmem:[#allocation2 + $0x10] sm:$0xff]
      %v668 = vld [vmem:[#allocation2 + $0x18] sm:$0x3f]
      %v669 = vld [vmem:[%s5] sm:$0xff]
      %v670 = vld [vmem:[%s5 + $0x8] sm:$0xff]
      %v671 = vld [vmem:[%s5 + $0x10] sm:$0xff]
      %v672 = vld [vmem:[%s6] sm:$0x1]
      %v674 = vperm.slane %v672, 0
      %v677 = vsel %vm391, %v665, 0
      %v680 = vsel %vm391, %v666, 0
      %v683 = vsel %vm391, %v667, 0
      %v686 = vsel %vm391, %v668, 0
      %688 = vmatpush.msra.mxu0 0.0
      %689 = vmatpush.msra.mxu0 0.0
      %690 = vmatpush.msra.mxu0 0.0
      %691 = vmatpush.msra.mxu0 0.0
      %692 = vmatpush.msra.mxu0 0.0
      %693 = vmatpush.msra.mxu0 0.0
      %694 = vmatpush.msra.mxu0 0.0
      %695 = vmatpush.msra.mxu0 0.0
      %696 = vmatpush.msra.mxu0 0.0
      %697 = vmatpush.msra.mxu0 0.0
      %698 = vmatpush.msra.mxu0 0.0
      %699 = vmatpush.msra.mxu0 0.0
      %700 = vmatpush.msra.mxu0 0.0
      %701 = vmatpush.msra.mxu0 %v671
      %702 = vmatpush.msra.mxu0 %v670
      %703 = vmatpush.msra.mxu0 %v669
      %704 = vmatmul.f32.gmra.mxu0 %v677
      %v705 = vpop.f32.mrf.mxu0
      %v706 = vadd.f32 %v674, %v705
      %707 = vmatmul.f32.gmra.mxu0 %v680
      %v708 = vpop.f32.mrf.mxu0
      %v709 = vadd.f32 %v674, %v708
      %710 = vmatmul.f32.gmra.mxu0 %v683
      %v711 = vpop.f32.mrf.mxu0
      %v712 = vadd.f32 %v674, %v711
      %713 = vmatmul.f32.gmra.mxu0 %v686
      %v714 = vpop.f32.mrf.mxu0
      %v715 = vadd.f32 %v674, %v714
      %716 = vdwg.mxu0
      %v717 = vld [vmem:[%s7] sm:$0xff]
      %v718 = vld [vmem:[%s7 + $0x8] sm:$0xff]
      %v719 = vld [vmem:[%s7 + $0x10] sm:$0xff]
      %v720 = vld [vmem:[%s7 + $0x18] sm:$0x3f]
      %v721 = vld [vmem:[%s8] sm:$0xff]
      %v722 = vld [vmem:[%s8 + $0x8] sm:$0xff]
      %v723 = vld [vmem:[%s8 + $0x10] sm:$0xff]
      %v724 = vld [vmem:[%s8 + $0x18] sm:$0x3f]
      %v725 = vld [vmem:[%s9] sm:$0xff]
      %v726 = vld [vmem:[%s10] sm:$0x1]
      %vm727 = vcmask 130048
      %v728 = vsel %vm727, %v706, 0.0
      %v729 = vsel %vm727, %v709, 0.0
      %v730 = vadd.f32 %v728, %v729
      %v731 = vsel %vm727, %v712, 0.0
      %v732 = vadd.f32 %v730, %v731
      %vm733 = vcmask 128000
      %v734 = vsel %vm733, %v715, 0.0
      %v735 = vadd.f32 %v732, %v734
      %v736 = vrot.slane %v735, 4
      %v737 = vadd.f32 %v735, %v736
      %v738 = vrot.slane %v737, 2
      %v739 = vadd.f32 %v737, %v738
      %v740 = vrot.slane %v739, 1
      %v741 = vadd.f32 %v739, %v740
      %v742 = vmul.f32 %v741, %v524
      %v743 = vsub.f32 %v706, %v742
      %v744 = vsub.f32 %v709, %v742
      %v745 = vsub.f32 %v712, %v742
      %v746 = vsub.f32 %v715, %v742
      %v747 = vmul.f32 %v743, %v743
      %v748 = vmul.f32 %v744, %v744
      %v749 = vmul.f32 %v745, %v745
      %v750 = vmul.f32 %v746, %v746
      %v751 = vsel %vm727, %v747, 0.0
      %v752 = vsel %vm727, %v748, 0.0
      %v753 = vadd.f32 %v751, %v752
      %v754 = vsel %vm727, %v749, 0.0
      %v755 = vadd.f32 %v753, %v754
      %v756 = vsel %vm733, %v750, 0.0
      %v757 = vadd.f32 %v755, %v756
      %v758 = vrot.slane %v757, 4
      %v759 = vadd.f32 %v757, %v758
      %v760 = vrot.slane %v759, 2
      %v761 = vadd.f32 %v759, %v760
      %v762 = vrot.slane %v761, 1
      %v763 = vadd.f32 %v761, %v762
      %v764 = vmul.f32 %v763, %v524
      %v765 = vadd.f32 %v764, 1e-05
      %v766 = vrsqrt.pop %v765
      %v767 = vmul.f32 %v766, %v765
      %v768 = vmul.f32 %v767, %v766
      %v769 = vmul.f32 0.5, %v768
      %v770 = vsub.f32 1.5, %v769
      %v771 = vmul.f32 %v766, %v770
      %vm772 = vweird.f32 %v765
      %vm773 = vweird.f32 %v766
      %vm774 = vmor %vm772, %vm773
      %v775 = vsel %vm774, %v766, %v771
      %v776 = vmul.f32 %v743, %v775
      %v777 = vmul.f32 %v744, %v775
      %v778 = vmul.f32 %v745, %v775
      %v779 = vmul.f32 %v746, %v775
      %781 = vset.pattern.permute.xlu0 0
      %782 = vperm.xlu0 %781, %v717
      %v783 = vpop.permute.xlu0 %782
      %786 = vset.pattern.permute.xlu0 0
      %787 = vperm.xlu0 %786, %v718
      %v788 = vpop.permute.xlu0 %787
      %791 = vset.pattern.permute.xlu0 0
      %792 = vperm.xlu0 %791, %v719
      %v793 = vpop.permute.xlu0 %792
      %796 = vset.pattern.permute.xlu0 0
      %797 = vperm.xlu0 %796, %v720
      %v798 = vpop.permute.xlu0 %797
      %v800 = vmul.f32 %v776, %v783
      %v801 = vmul.f32 %v777, %v788
      %v802 = vmul.f32 %v778, %v793
      %v803 = vmul.f32 %v779, %v798
      %805 = vset.pattern.permute.xlu0 0
      %806 = vperm.xlu0 %805, %v721
      %v807 = vpop.permute.xlu0 %806
      %810 = vset.pattern.permute.xlu0 0
      %811 = vperm.xlu0 %810, %v722
      %v812 = vpop.permute.xlu0 %811
      %815 = vset.pattern.permute.xlu0 0
      %816 = vperm.xlu0 %815, %v723
      %v817 = vpop.permute.xlu0 %816
      %820 = vset.pattern.permute.xlu0 0
      %821 = vperm.xlu0 %820, %v724
      %v822 = vpop.permute.xlu0 %821
      %v824 = vadd.f32 %v800, %v807
      %v825 = vadd.f32 %v801, %v812
      %v826 = vadd.f32 %v802, %v817
      %v827 = vadd.f32 %v803, %v822
      %v828 = vmax.f32 %v824, 0.0
      %v829 = vmax.f32 %v825, 0.0
      %v830 = vmax.f32 %v826, 0.0
      %v831 = vmax.f32 %v827, 0.0
      %v833 = vperm.slane %v726, 0
      %v835 = vsel %vm397, %v615, 0
      %v837 = vsel %vm397, %v616, 0
      %v839 = vsel %vm397, %v617, 0
      %v841 = vsel %vm397, %v618, 0
      %843 = vmatpush.msra.mxu0 0.0
      %844 = vmatpush.msra.mxu0 0.0
      %845 = vmatpush.msra.mxu0 0.0
      %846 = vmatpush.msra.mxu0 0.0
      %847 = vmatpush.msra.mxu0 0.0
      %848 = vmatpush.msra.mxu0 0.0
      %849 = vmatpush.msra.mxu0 0.0
      %850 = vmatpush.msra.mxu0 0.0
      %851 = vmatpush.msra.mxu0 0.0
      %852 = vmatpush.msra.mxu0 0.0
      %853 = vmatpush.msra.mxu0 0.0
      %854 = vmatpush.msra.mxu0 0.0
      %855 = vmatpush.msra.mxu0 0.0
      %856 = vmatpush.msra.mxu0 0.0
      %857 = vmatpush.msra.mxu0 0.0
      %858 = vmatpush.msra.mxu0 %v725
      %859 = vmatmul.f32.gmra.mxu0 %v835
      %v860 = vpop.f32.mrf.mxu0
      %v861 = vadd.f32 %v833, %v860
      %862 = vmatmul.f32.gmra.mxu0 %v837
      %v863 = vpop.f32.mrf.mxu0
      %v864 = vadd.f32 %v833, %v863
      %865 = vmatmul.f32.gmra.mxu0 %v839
      %v866 = vpop.f32.mrf.mxu0
      %v867 = vadd.f32 %v833, %v866
      %868 = vmatmul.f32.gmra.mxu0 %v841
      %v869 = vpop.f32.mrf.mxu0
      %v870 = vadd.f32 %v833, %v869
      %871 = vdwg.mxu0
      %v872 = vadd.f32 %v828, %v861
      %v873 = vadd.f32 %v829, %v864
      %v874 = vadd.f32 %v830, %v867
      %v875 = vadd.f32 %v831, %v870
      %876 = vst.msk [vmem:[%s386] sm:$0xff] %vm727, %v872
      %877 = vst.msk [vmem:[%s386 + $0x8] sm:$0xff] %vm727, %v873
      %878 = vst.msk [vmem:[%s386 + $0x10] sm:$0xff] %vm727, %v874
      %879 = vst.msk [vmem:[%s386 + $0x18] sm:$0x3f] %vm733, %v875
      %p880 = scmp.lt.s32.totalorder %s22, 1
      %s881 = scalar_select %p880, %s22, 1
      %s882 = smul.addr %s881, 4
      %s883 = smul.addr %s882, 8
      %s884 = scalar_lea.vmem %s11, %s883
      // Predicated region
      $region65: #{tpu_custom_call.1} parent=63 // pred_check
        %p885 = pneg %p276
      $region66: #{tpu_custom_call.1} parent=63 // pred_check_branch
        %887 = sbr.rel (%p885) target = $region68
      $region67: #{tpu_custom_call.1} parent=63 // pred_region
        _
      $region68: #{tpu_custom_call.1} parent=63 // pred_fallthru
        _
    $region64: #{tpu_custom_call.1} parent=5 // pred_fallthru
      _
    %p888 = scmp.le.s32.totalorder 2, %s17
    // Predicated region
    $region69: #{tpu_custom_call.1} parent=5 // pred_check
      %p889 = pneg %p888
    $region70: #{tpu_custom_call.1} parent=5 // pred_check_branch
      %891 = sbr.rel (%p889) target = $region72
    $region71: #{tpu_custom_call.1} parent=5 // pred_region
      %s892 = ssub.s32 %s17, 2
      // Predicated region
      $region73: #{tpu_custom_call.1} parent=71 // pred_check
        %p893 = pneg %p282
      $region74: #{tpu_custom_call.1} parent=71 // pred_check_branch
        %895 = sbr.rel (%p893) target = $region76
      $region75: #{tpu_custom_call.1} parent=71 // pred_region
        %p896 = scmp.lt.s32.totalorder %s23, 1
        %s897 = scalar_select %p896, %s23, 1
        %s898 = smul.addr %s897, 4
        %s899 = smul.addr %s898, 8
        %s900 = scalar_lea.vmem %s11, %s899
      $region76: #{tpu_custom_call.1} parent=71 // pred_fallthru
        _
    $region72: #{tpu_custom_call.1} parent=5 // pred_fallthru
      _
  $region6: #{tpu_custom_call.1} parent=0 // loop_footer
    %s21 = sadd.s32 1, %s17
  $region7: #{tpu_custom_call.1} parent=0 // loop_footer_branch
    %16 = sbr.rel target = $region3
  $region8: #{tpu_custom_call.1} parent=0 // loop_exit
    _

</llo_original>
